<compile_context>
chip_gen: v7x
topology: tpu7x:2x2x1
jax: 0.10.0
libtpu: 0.0.40
codegen_flags: <defaults>
</compile_context>

<pallas_src>
import functools

import jax
import jax.numpy as jnp
from jax.experimental import pallas as pl
from jax.experimental.pallas import tpu as pltpu

LANE = 128        # TPU vreg lane width
DEFAULT_TM = 512  # batch tile for the tiled path (~85% of HBM roofline)


def _linear_kernel(x_ref, w_ref, b_ref, o_ref):
    # MXU matmul with f32 accumulation; bias add kept in f32 on the VPU
    # (works for bf16 or f32 operands; no bf16 VALU work needed on v5e).
    acc = jnp.dot(x_ref[...], w_ref[...], preferred_element_type=jnp.float32)
    o_ref[...] = (acc + b_ref[...]).astype(o_ref.dtype)


def _use_bf16_operands():
    """bf16 MXU operands on v6e/v7x; stay f32 elsewhere (e.g. v5e) / on failure."""
    try:
        kind = jax.devices()[0].device_kind.lower()
    except Exception:  # pragma: no cover - defensive
        return False
    return ("v6" in kind) or ("v7" in kind)


def prepare_params(weight, bias, use_bf16=False):
    """One-time parameter repack (do NOT call per forward pass).

    weight: (out_size, emb_size) float32  -- PyTorch nn.Linear layout
    bias:   (out_size,) float32
    returns (w_padded: (emb_size, out_padded) [bf16 or f32],
             b_padded: (1, out_padded) float32)
            with out_padded a multiple of 128 and padded columns zeroed.
    """
    out_size, emb = weight.shape
    out_padded = max(LANE, ((out_size + LANE - 1) // LANE) * LANE)
    w_dtype = jnp.bfloat16 if use_bf16 else weight.dtype
    w_padded = jnp.zeros((emb, out_padded), w_dtype)
    w_padded = w_padded.at[:, :out_size].set(weight.T.astype(w_dtype))
    # Bias stays f32: added after the f32 MXU accumulation.
    b_padded = jnp.zeros((1, out_padded), jnp.float32)
    b_padded = b_padded.at[0, :out_size].set(bias.astype(jnp.float32))
    return w_padded, b_padded


def _cost(batch, emb, out_padded, x_bytes, w_bytes, b_bytes):
    return pl.CostEstimate(
        flops=2 * batch * emb * out_padded,
        transcendentals=0,
        bytes_accessed=x_bytes + w_bytes + b_bytes + batch * out_padded * 4,
    )


@functools.partial(jax.jit, static_argnames=("out_size", "tm"))
def lnet_forward(x, w_padded, b_padded, out_size, tm=DEFAULT_TM):
    """y = x @ weight.T + bias  (PyTorch nn.Linear semantics).

    x:        (batch, emb_size) float32
    w_padded: (emb_size, out_padded) from prepare_params()  (bf16 or f32)
    b_padded: (1, out_padded) float32 from prepare_params()
    returns   (batch, out_size) float32
    """
    batch, emb = x.shape
    out_padded = w_padded.shape[1]

    # Match MXU operand dtype (cast fuses into this jit; free for f32).
    x_op = x.astype(w_padded.dtype)

    cost = _cost(
        batch, emb, out_padded,
        x_op.size * x_op.dtype.itemsize,
        w_padded.size * w_padded.dtype.itemsize,
        b_padded.size * b_padded.dtype.itemsize,
    )

    if batch >= 2 * tm and batch % tm == 0:
        # Batch-tiled path: weight/bias VMEM-resident across the grid; only
        # x/out stream over the batch. "parallel" lets v7x shard the grid
        # across its 2 TensorCores.
        y_padded = pl.pallas_call(
            _linear_kernel,
            out_shape=jax.ShapeDtypeStruct((batch, out_padded), jnp.float32),
            grid_spec=pltpu.PrefetchScalarGridSpec(
                num_scalar_prefetch=0,
                grid=(batch // tm,),
                in_specs=[
                    pl.BlockSpec((tm, emb), lambda i: (i, 0)),
                    pl.BlockSpec((emb, out_padded), lambda i: (0, 0)),  # resident
                    pl.BlockSpec((1, out_padded), lambda i: (0, 0)),    # resident
                ],
                out_specs=pl.BlockSpec((tm, out_padded), lambda i: (i, 0)),
            ),
            compiler_params=pltpu.CompilerParams(
                dimension_semantics=("parallel",),
                # Explicit budget so tile choice stays valid on v7x's smaller
                # VMEM (64 MiB physical / 32 MiB scoped) as well as v5e/v6e.
                vmem_limit_bytes=32 * 1024 * 1024,
            ),
            cost_estimate=cost,
        )(x_op, w_padded, b_padded)
    else:
        # Small-batch path: whole-array VMEM blocks, no grid, no pipelining.
        y_padded = pl.pallas_call(
            _linear_kernel,
            out_shape=jax.ShapeDtypeStruct((batch, out_padded), jnp.float32),
            in_specs=[
                pl.BlockSpec(memory_space=pltpu.MemorySpace.VMEM),
                pl.BlockSpec(memory_space=pltpu.MemorySpace.VMEM),
                pl.BlockSpec(memory_space=pltpu.MemorySpace.VMEM),
            ],
            out_specs=pl.BlockSpec(memory_space=pltpu.MemorySpace.VMEM),
            cost_estimate=cost,
        )(x_op, w_padded, b_padded)

    # Padded weight/bias columns are zero, so this slice (fused inside the
    # same jit) recovers the exact nn.Linear output.
    return y_padded[:, :out_size]


if __name__ == "__main__":
    emb_size = 256
    out_size = 10   # CIFAR-10 classifier head
    batch = 8

    key = jax.random.PRNGKey(0)
    kx, kw, kb = jax.random.split(key, 3)

    # Deterministic parameter init (mimics nn.Linear uniform(-1/sqrt(fan_in), .))
    bound = 1.0 / jnp.sqrt(jnp.float32(emb_size))
    weight = jax.random.uniform(
        kw, (out_size, emb_size), jnp.float32, -bound, bound
    )
    bias = jax.random.uniform(kb, (out_size,), jnp.float32, -bound, bound)

    x = jax.random.normal(kx, (batch, emb_size), jnp.float32)

    use_bf16 = _use_bf16_operands()

    # Repack parameters once; reuse across calls.
    w_padded, b_padded = prepare_params(weight, bias, use_bf16=use_bf16)

    y = lnet_forward(x, w_padded, b_padded, out_size)
    jax.block_until_ready(y)

    # Reference check in plain JAX (same semantics as torch nn.Linear).
    y_ref = x @ weight.T + bias
    assert y.shape == (batch, out_size)
    if use_bf16:
        assert jnp.allclose(y, y_ref, atol=5e-2, rtol=5e-2)
    else:
        assert jnp.allclose(y, y_ref, atol=1e-5, rtol=1e-5)

    print("KERNEL_OK")
</pallas_src>

<mosaic_0001>
module attributes {stable_mosaic.version = 11 : i64} {
  func.func @_linear_kernel(%arg0: memref<8x256xf32, #tpu.memory_space<vmem>>, %arg1: memref<256x128xf32, #tpu.memory_space<vmem>>, %arg2: memref<1x128xf32, #tpu.memory_space<vmem>>, %arg3: memref<8x128xf32, #tpu.memory_space<vmem>>) attributes {dimension_semantics = [], scalar_prefetch = 0 : i64, scratch_operands = 0 : i64, tpu.core_type = #tpu.core_type<tc>} {
    %c0 = arith.constant 0 : index
    %c0_0 = arith.constant 0 : index
    %0 = vector.load %arg0[%c0, %c0_0] : memref<8x256xf32, #tpu.memory_space<vmem>>, vector<8x256xf32>
    %c0_1 = arith.constant 0 : index
    %c0_2 = arith.constant 0 : index
    %1 = vector.load %arg1[%c0_1, %c0_2] : memref<256x128xf32, #tpu.memory_space<vmem>>, vector<256x128xf32>
    %cst = arith.constant dense<0.000000e+00> : vector<8x128xf32>
    %2 = tpu.matmul %0, %1, %cst {dimension_numbers = #tpu.dot_dimension_numbers<[1], [0], [0], [1], [0, 0, 1, 1], [], []>} : vector<8x256xf32>, vector<256x128xf32>, vector<8x128xf32> -> vector<8x128xf32>
    %c0_3 = arith.constant 0 : index
    %c0_4 = arith.constant 0 : index
    %3 = vector.load %arg2[%c0_3, %c0_4] : memref<1x128xf32, #tpu.memory_space<vmem>>, vector<1x128xf32>
    %4 = vector.broadcast %3 : vector<1x128xf32> to vector<8x128xf32>
    %5 = arith.addf %2, %4 : vector<8x128xf32>
    %c0_5 = arith.constant 0 : index
    %c0_6 = arith.constant 0 : index
    %6 = vector.load %arg3[%c0_5, %c0_6] : memref<8x128xf32, #tpu.memory_space<vmem>>, vector<8x128xf32>
    tpu.vector_store %arg3[%c0_5, %c0_6], %5 {strides = array<i32>} : memref<8x128xf32, #tpu.memory_space<vmem>>, vector<8x128xf32>,
    return
  }
}

</mosaic_0001>

<llo_original>
// kernel: lnet_forward.1
$region0: #{lnet_forward.1}
  #allocation0 [shape = 'u32[]', space=smem, size = 0x4, offset = 0x4, fixed_abs, tag = 'smem constant byte address 0x4 - core index']
  #allocation1 [shape = 'u32[144,128]{1,0:T(1,128)}', space=vmem, size = 0x12000, scoped, tag = 'internal scratch']
  %s0 = inlined_call_operand.hbm [shape: f32[8,256], index: 0, kind: input, shape index: {}]
  %s1 = inlined_call_operand.hbm [shape: f32[256,128], index: 1, kind: input, shape index: {}]
  %s2 = inlined_call_operand.vmem [shape: f32[1,128], index: 2, kind: input, shape index: {}]
  %s3 = inlined_call_operand.hbm [shape: f32[8,128], index: 3, kind: output, shape index: {}]
  %s4 = sld [smem:[#allocation0]]
  $region30: #{lnet_forward.1} parent=0
    _
  %s6 = ssub.s32 1, %s4
  %s7 = scalar_select 0, %s6, %s4
  $region1: #{lnet_forward.1} parent=0
    #allocation2 [shape = 'u8[8192]{0}', space=vmem, size = 0x2000, scoped, tag = 'input window, operand 0, single buffered']
    #allocation3 [shape = 's32[1]{0}', space=sflag, size = 0x4, scoped, tag = 'scoped memory for lnet_forward.1']
    #allocation4 [shape = 's32[1]{0}', space=sflag, size = 0x4, scoped, tag = 'scoped memory for lnet_forward.1']
    #allocation5 [shape = 'u8[131072]{0}', space=vmem, size = 0x20000, scoped, tag = 'input window, operand 1, single buffered']
    #allocation6 [shape = 's32[1]{0}', space=sflag, size = 0x4, scoped, tag = 'scoped memory for lnet_forward.1']
    #allocation7 [shape = 'u8[4096]{0}', space=vmem, size = 0x1000, scoped, tag = 'output window, operand 0, single buffered']
    %8 = vsyncpa [#allocation3], 0
    %9 = vsyncpa [#allocation6], 0
    %10 = vsyncpa [#allocation4], 0
    // Predicated region
    $region2: #{lnet_forward.1} parent=1 // pred_check
      _
    $region3: #{lnet_forward.1} parent=1 // pred_check_branch
      %12 = sbr.rel (0) target = $region5
    $region4: #{lnet_forward.1} parent=1 // pred_region
      %s14 = ssub.s32 256, 256
      %15 = vsyncadd [#allocation3], %s14
      %s17 = sshll.u32 [#allocation2], 4
      %s18 = int_to_ptr.vmem [resolvable:$true] %s17
      %20 = dma.hbm_to_vmem [thread:$0]  %s0, 256, %s18, [#allocation3]
    $region5: #{lnet_forward.1} parent=1 // pred_fallthru
      _
    // Predicated region
    $region6: #{lnet_forward.1} parent=1 // pred_check
      _
    $region7: #{lnet_forward.1} parent=1 // pred_check_branch
      %22 = sbr.rel (0) target = $region9
    $region8: #{lnet_forward.1} parent=1 // pred_region
      %s24 = ssub.s32 4096, 4096
      %25 = vsyncadd [#allocation6], %s24
      %s26 = sshll.u32 [#allocation5], 4
      %s27 = int_to_ptr.vmem [resolvable:$true] %s26
      %32 = dma.hbm_to_vmem [thread:$0]  %s1, 4096, %s27, [#allocation6], 128, 128, 8
    $region9: #{lnet_forward.1} parent=1 // pred_fallthru
      _
    // Predicated region
    $region10: #{lnet_forward.1} parent=1 // pred_check
      _
    $region11: #{lnet_forward.1} parent=1 // pred_check_branch
      %34 = sbr.rel (0) target = $region13
    $region12: #{lnet_forward.1} parent=1 // pred_region
      _
    $region13: #{lnet_forward.1} parent=1 // pred_fallthru
      _
    // Predicated region
    $region14: #{lnet_forward.1} parent=1 // pred_check
      _
    $region15: #{lnet_forward.1} parent=1 // pred_check_branch
      %36 = sbr.rel (0) target = $region17
    $region16: #{lnet_forward.1} parent=1 // pred_region
      %37 = dma.done [#allocation3], 256
    $region17: #{lnet_forward.1} parent=1 // pred_fallthru
      _
    // Predicated region
    $region18: #{lnet_forward.1} parent=1 // pred_check
      _
    $region19: #{lnet_forward.1} parent=1 // pred_check_branch
      %39 = sbr.rel (0) target = $region21
    $region20: #{lnet_forward.1} parent=1 // pred_region
      %40 = dma.done [#allocation6], 4096
    $region21: #{lnet_forward.1} parent=1 // pred_fallthru
      _
    %v41 = vld [vmem:[#allocation2] sm:$0xff]
    %v42 = vld [vmem:[#allocation2 + $0x8] sm:$0xff]
    %v43 = vld [vmem:[#allocation5] sm:$0xff]
    %v44 = vld [vmem:[#allocation5 + $0x8] sm:$0xff]
    %v45 = vld [vmem:[#allocation5 + $0x10] sm:$0xff]
    %v46 = vld [vmem:[#allocation5 + $0x18] sm:$0xff]
    %v47 = vld [vmem:[#allocation5 + $0x20] sm:$0xff]
    %v48 = vld [vmem:[#allocation5 + $0x28] sm:$0xff]
    %v49 = vld [vmem:[#allocation5 + $0x30] sm:$0xff]
    %v50 = vld [vmem:[#allocation5 + $0x38] sm:$0xff]
    %v51 = vld [vmem:[#allocation5 + $0x40] sm:$0xff]
    %v52 = vld [vmem:[#allocation5 + $0x48] sm:$0xff]
    %v53 = vld [vmem:[#allocation5 + $0x50] sm:$0xff]
    %v54 = vld [vmem:[#allocation5 + $0x58] sm:$0xff]
    %v55 = vld [vmem:[#allocation5 + $0x60] sm:$0xff]
    %v56 = vld [vmem:[#allocation5 + $0x68] sm:$0xff]
    %v57 = vld [vmem:[#allocation5 + $0x70] sm:$0xff]
    %v58 = vld [vmem:[#allocation5 + $0x78] sm:$0xff]
    %v59 = vld [vmem:[#allocation5 + $0x80] sm:$0xff]
    %v60 = vld [vmem:[#allocation5 + $0x88] sm:$0xff]
    %v61 = vld [vmem:[#allocation5 + $0x90] sm:$0xff]
    %v62 = vld [vmem:[#allocation5 + $0x98] sm:$0xff]
    %v63 = vld [vmem:[#allocation5 + $0xa0] sm:$0xff]
    %v64 = vld [vmem:[#allocation5 + $0xa8] sm:$0xff]
    %v65 = vld [vmem:[#allocation5 + $0xb0] sm:$0xff]
    %v66 = vld [vmem:[#allocation5 + $0xb8] sm:$0xff]
    %v67 = vld [vmem:[#allocation5 + $0xc0] sm:$0xff]
    %v68 = vld [vmem:[#allocation5 + $0xc8] sm:$0xff]
    %v69 = vld [vmem:[#allocation5 + $0xd0] sm:$0xff]
    %v70 = vld [vmem:[#allocation5 + $0xd8] sm:$0xff]
    %v71 = vld [vmem:[#allocation5 + $0xe0] sm:$0xff]
    %v72 = vld [vmem:[#allocation5 + $0xe8] sm:$0xff]
    %v73 = vld [vmem:[#allocation5 + $0xf0] sm:$0xff]
    %v74 = vld [vmem:[#allocation5 + $0xf8] sm:$0xff]
    %v75 = vld [vmem:[%s2] sm:$0x1]
    %v77 = vlaneseq
    %v78 = vshrl.u32 %v77, 7
    %v79 = vsub.s32 0, %v78
    %v80 = vrot.slane %v75, %v79
    %82 = vmatprep.subr.mxu0 0.0
    %83 = vmatpush1.msra.mxu0 %v43
    %84 = vmatprep.subr.mxu0 0.0
    %85 = vmatpush1.msra.mxu0 %v44
    %86 = vmatprep.subr.mxu0 0.0
    %87 = vmatpush1.msra.mxu0 %v45
    %88 = vmatprep.subr.mxu0 0.0
    %89 = vmatpush1.msra.mxu0 %v46
    %90 = vmatprep.subr.mxu0 0.0
    %91 = vmatpush1.msra.mxu0 %v47
    %92 = vmatprep.subr.mxu0 0.0
    %93 = vmatpush1.msra.mxu0 %v48
    %94 = vmatprep.subr.mxu0 0.0
    %95 = vmatpush1.msra.mxu0 %v49
    %96 = vmatprep.subr.mxu0 0.0
    %97 = vmatpush1.msra.mxu0 %v50
    %98 = vmatprep.subr.mxu0 0.0
    %99 = vmatpush1.msra.mxu0 %v51
    %100 = vmatprep.subr.mxu0 0.0
    %101 = vmatpush1.msra.mxu0 %v52
    %102 = vmatprep.subr.mxu0 0.0
    %103 = vmatpush1.msra.mxu0 %v53
    %104 = vmatprep.subr.mxu0 0.0
    %105 = vmatpush1.msra.mxu0 %v54
    %106 = vmatprep.subr.mxu0 0.0
    %107 = vmatpush1.msra.mxu0 %v55
    %108 = vmatprep.subr.mxu0 0.0
    %109 = vmatpush1.msra.mxu0 %v56
    %110 = vmatprep.subr.mxu0 0.0
    %111 = vmatpush1.msra.mxu0 %v57
    %112 = vmatprep.subr.mxu0 0.0
    %113 = vmatpush1.msra.mxu0 %v58
    %114 = vmatprep.subr.mxu0 0.0
    %115 = vmatpush1.msra.mxu0 %v59
    %116 = vmatprep.subr.mxu0 0.0
    %117 = vmatpush1.msra.mxu0 %v60
    %118 = vmatprep.subr.mxu0 0.0
    %119 = vmatpush1.msra.mxu0 %v61
    %120 = vmatprep.subr.mxu0 0.0
    %121 = vmatpush1.msra.mxu0 %v62
    %122 = vmatprep.subr.mxu0 0.0
    %123 = vmatpush1.msra.mxu0 %v63
    %124 = vmatprep.subr.mxu0 0.0
    %125 = vmatpush1.msra.mxu0 %v64
    %126 = vmatprep.subr.mxu0 0.0
    %127 = vmatpush1.msra.mxu0 %v65
    %128 = vmatprep.subr.mxu0 0.0
    %129 = vmatpush1.msra.mxu0 %v66
    %130 = vmatprep.subr.mxu0 0.0
    %131 = vmatpush1.msra.mxu0 %v67
    %132 = vmatprep.subr.mxu0 0.0
    %133 = vmatpush1.msra.mxu0 %v68
    %134 = vmatprep.subr.mxu0 0.0
    %135 = vmatpush1.msra.mxu0 %v69
    %136 = vmatprep.subr.mxu0 0.0
    %137 = vmatpush1.msra.mxu0 %v70
    %138 = vmatprep.subr.mxu0 0.0
    %139 = vmatpush1.msra.mxu0 %v71
    %140 = vmatprep.subr.mxu0 0.0
    %141 = vmatpush1.msra.mxu0 %v72
    %142 = vmatprep.subr.mxu0 0.0
    %143 = vmatpush1.msra.mxu0 %v73
    %144 = vmatprep.subr.mxu0 0.0
    %145 = vmatpush1.msra.mxu0 %v74
    %146 = vmatprep.mubr.f32.mxu0 %v42
    %147 = vmatmul.mubr.f32.gmra.mrb[0].mxu0 %v41
    %v148 = vpop.f32.mrb[0].mxu0
    %v149 = vadd.f32 %v80, %v148
    %v150 = vpop.f32.mrb[0].mxu0
    %151 = vdwg.mxu0
    %152 = vst [vmem:[#allocation7] sm:$0xff] %v149
    // Predicated region
    $region22: #{lnet_forward.1} parent=1 // pred_check
      _
    $region23: #{lnet_forward.1} parent=1 // pred_check_branch
      %154 = sbr.rel (0) target = $region25
    $region24: #{lnet_forward.1} parent=1 // pred_region
      %s156 = ssub.s32 128, 128
      %157 = vsyncadd [#allocation4], %s156
      %s159 = sshll.u32 [#allocation7], 4
      %s160 = int_to_ptr.vmem [resolvable:$true] %s159
      %162 = dma.vmem_to_hbm [thread:$0]  %s160, 128, %s3, [#allocation4]
    $region25: #{lnet_forward.1} parent=1 // pred_fallthru
      _
    // Predicated region
    $region26: #{lnet_forward.1} parent=1 // pred_check
      _
    $region27: #{lnet_forward.1} parent=1 // pred_check_branch
      %164 = sbr.rel (0) target = $region29
    $region28: #{lnet_forward.1} parent=1 // pred_region
      %165 = dma.done [#allocation4], 128
    $region29: #{lnet_forward.1} parent=1 // pred_fallthru
      _
    %166 = vsyncpa [#allocation3], 1
    %167 = vsyncpa [#allocation6], 1
    %168 = vsyncpa [#allocation4], 1

</llo_original>
